<compile_context>
chip_gen: v6e
topology: v6e:2x2x1
jax: 0.10.0
libtpu: 0.0.40
codegen_flags: <defaults>
</compile_context>

<pallas_src>
import jax
import jax.numpy as jnp
from jax.experimental import pallas as pl
from jax.experimental.pallas import tpu as pltpu


def _normalizer_kernel(x_ref, mean_ref, inv_std_ref, o_ref):
    # x_ref:       (B_blk, F, T_blk) tile
    # mean_ref:    (F, 1)  — resident, broadcasts over lanes (T)
    # inv_std_ref: (F, 1)  — resident, broadcasts over lanes (T)
    x = x_ref[...]
    m = mean_ref[...]
    inv = inv_std_ref[...]
    o_ref[...] = (x - m[None, :, :]) * inv[None, :, :]


def _choose_blocks(B, F, T, itemsize, target_bytes=2 * 1024 * 1024):
    """Pick (b_blk, t_blk) giving ~target_bytes per block.

    T tile must be a multiple of 128 (lane-dense) or the full T extent.
    F is always kept at full extent (second-to-last dim rule satisfied).
    """
    if T % 128 == 0:
        max_t = max(1, target_bytes // (F * itemsize))
        t_blk = min(T, max(128, (max_t // 128) * 128))
    else:
        # Ragged / short time axis: use the full extent (always legal).
        t_blk = T
    per_batch_elem = F * t_blk * itemsize
    b_blk = int(min(B, max(1, target_bytes // per_batch_elem)))
    return b_blk, t_blk


def static_normalizer(x, mean, std, *, b_blk=None, t_blk=None):
    """Pallas implementation of StaticNormalizer.forward.

    x:    (B, F, T) float32
    mean: (F, 1)    float32
    std:  (F, 1)    float32
    returns (B, F, T) float32
    """
    B, F, T = x.shape
    assert mean.shape == (F, 1) and std.shape == (F, 1)

    # std is a persistent buffer: compute its reciprocal once, outside the
    # kernel, and multiply inside (frees the per-element divide).
    inv_std = (1.0 / std).astype(x.dtype)
    mean = mean.astype(x.dtype)

    auto_b, auto_t = _choose_blocks(B, F, T, x.dtype.itemsize)
    b_blk = auto_b if b_blk is None else b_blk
    t_blk = auto_t if t_blk is None else t_blk

    grid = (pl.cdiv(B, b_blk), pl.cdiv(T, t_blk))

    return pl.pallas_call(
        _normalizer_kernel,
        out_shape=jax.ShapeDtypeStruct((B, F, T), x.dtype),
        grid_spec=pltpu.PrefetchScalarGridSpec(
            num_scalar_prefetch=0,
            grid=grid,
            in_specs=[
                pl.BlockSpec((b_blk, F, t_blk), lambda b, t: (b, 0, t)),
                pl.BlockSpec((F, 1), lambda b, t: (0, 0)),
                pl.BlockSpec((F, 1), lambda b, t: (0, 0)),
            ],
            out_specs=pl.BlockSpec((b_blk, F, t_blk), lambda b, t: (b, 0, t)),
        ),
        compiler_params=pltpu.CompilerParams(
            dimension_semantics=("parallel", "parallel"),
        ),
    )(x, mean, inv_std)


if __name__ == "__main__":
    key = jax.random.PRNGKey(0)
    kx, km, ks = jax.random.split(key, 3)

    B, F, T = 2, 16, 256  # batch, input_size, time frames

    x = jax.random.normal(kx, (B, F, T), dtype=jnp.float32)

    # Buffers as in __init__ are zeros/ones (identity). Exercise the kernel
    # with nontrivial statistics, as would be installed via set_statistics().
    mean = jax.random.normal(km, (F, 1), dtype=jnp.float32)
    std = jnp.abs(jax.random.normal(ks, (F, 1), dtype=jnp.float32)) + 0.5

    # Force small explicit tiles so the multi-block / two-axis grid path is
    # exercised even at this tiny test size (grid = (2, 2)).
    out = static_normalizer(x, mean, std, b_blk=1, t_blk=128)
    out = jax.block_until_ready(out)

    # Reference check against plain-JAX broadcast semantics (== PyTorch).
    # Slightly loosened tolerance: multiply-by-reciprocal differs from exact
    # division by ~1 ulp.
    ref = (x - mean[None, :, :]) / std[None, :, :]
    assert out.shape == x.shape and out.dtype == x.dtype
    assert jnp.allclose(out, ref, atol=1e-5, rtol=1e-5)

    print("KERNEL_OK")
</pallas_src>

<mosaic_0001>
module attributes {stable_mosaic.version = 11 : i64} {
  func.func @_normalizer_kernel(%arg0: i32, %arg1: i32, %arg2: memref<1x16x128xf32, #tpu.memory_space<vmem>>, %arg3: memref<16x1xf32, #tpu.memory_space<vmem>>, %arg4: memref<16x1xf32, #tpu.memory_space<vmem>>, %arg5: memref<1x16x128xf32, #tpu.memory_space<vmem>>) attributes {dimension_semantics = [#tpu.dimension_semantics<parallel>, #tpu.dimension_semantics<parallel>], iteration_bounds = array<i64: 2, 2>, scalar_prefetch = 0 : i64, scratch_operands = 0 : i64, tpu.core_type = #tpu.core_type<tc>, window_params = [{transform_indices = @transform_0, window_bounds = array<i64: 1, 16, 128>}, {pipeline_mode = #tpu.pipeline_mode<synchronous>, transform_indices = @transform_1, window_bounds = array<i64: 16, 1>}, {pipeline_mode = #tpu.pipeline_mode<synchronous>, transform_indices = @transform_2, window_bounds = array<i64: 16, 1>}, {transform_indices = @transform_3, window_bounds = array<i64: 1, 16, 128>}]} {
    %c0 = arith.constant 0 : index
    %c0_0 = arith.constant 0 : index
    %c0_1 = arith.constant 0 : index
    %0 = vector.load %arg2[%c0, %c0_0, %c0_1] : memref<1x16x128xf32, #tpu.memory_space<vmem>>, vector<1x16x128xf32>
    %c0_2 = arith.constant 0 : index
    %c0_3 = arith.constant 0 : index
    %1 = vector.load %arg3[%c0_2, %c0_3] : memref<16x1xf32, #tpu.memory_space<vmem>>, vector<16x1xf32>
    %c0_4 = arith.constant 0 : index
    %c0_5 = arith.constant 0 : index
    %2 = vector.load %arg4[%c0_4, %c0_5] : memref<16x1xf32, #tpu.memory_space<vmem>>, vector<16x1xf32>
    %3 = vector.shape_cast %1 : vector<16x1xf32> to vector<1x16x1xf32>
    %4 = vector.broadcast %3 : vector<1x16x1xf32> to vector<1x16x128xf32>
    %5 = arith.subf %0, %4 : vector<1x16x128xf32>
    %6 = vector.shape_cast %2 : vector<16x1xf32> to vector<1x16x1xf32>
    %7 = vector.broadcast %6 : vector<1x16x1xf32> to vector<1x16x128xf32>
    %8 = arith.mulf %5, %7 : vector<1x16x128xf32>
    %c0_6 = arith.constant 0 : index
    %c0_7 = arith.constant 0 : index
    %c0_8 = arith.constant 0 : index
    %9 = vector.load %arg5[%c0_6, %c0_7, %c0_8] : memref<1x16x128xf32, #tpu.memory_space<vmem>>, vector<1x16x128xf32>
    tpu.vector_store %arg5[%c0_6, %c0_7, %c0_8], %8 {strides = array<i32>} : memref<1x16x128xf32, #tpu.memory_space<vmem>>, vector<1x16x128xf32>,
    return
  }
  func.func @transform_0(%arg0: i32, %arg1: i32) -> (i32, i32, i32) {
    %c0_i32 = arith.constant 0 : i32
    %c0_i32_0 = arith.constant 0 : i32
    return %arg0, %c0_i32, %arg1 : i32, i32, i32
  }
  func.func @transform_1(%arg0: i32, %arg1: i32) -> (i32, i32) {
    %c0_i32 = arith.constant 0 : i32
    %c0_i32_0 = arith.constant 0 : i32
    %c0_i32_1 = arith.constant 0 : i32
    return %c0_i32, %c0_i32_0 : i32, i32
  }
  func.func @transform_2(%arg0: i32, %arg1: i32) -> (i32, i32) {
    %c0_i32 = arith.constant 0 : i32
    %c0_i32_0 = arith.constant 0 : i32
    %c0_i32_1 = arith.constant 0 : i32
    return %c0_i32, %c0_i32_0 : i32, i32
  }
  func.func @transform_3(%arg0: i32, %arg1: i32) -> (i32, i32, i32) {
    %c0_i32 = arith.constant 0 : i32
    %c0_i32_0 = arith.constant 0 : i32
    return %arg0, %c0_i32, %arg1 : i32, i32, i32
  }
}

</mosaic_0001>

<llo_original>
// kernel: tpu_custom_call.1
$region0: #{tpu_custom_call.1}
  #allocation0 [shape = 'u32[]', space=smem, size = 0x4, offset = 0x4, fixed_abs, tag = 'smem constant byte address 0x4 - core index']
  #allocation1 [shape = 'u32[144,128]{1,0:T(1,128)}', space=vmem, size = 0x12000, scoped, tag = 'internal scratch']
  %s0 = inlined_call_operand.hbm [shape: f32[2,16,256], index: 0, kind: input, shape index: {}]
  %s1 = inlined_call_operand.vmem [shape: f32[16,1], index: 1, kind: input, shape index: {}]
  %s2 = inlined_call_operand.vmem [shape: f32[16,1], index: 2, kind: input, shape index: {}]
  %s3 = inlined_call_operand.hbm [shape: f32[2,16,256], index: 3, kind: output, shape index: {}]
  %s4 = sld [smem:[#allocation0]]
  $region49: #{tpu_custom_call.1} parent=0
    _
  %s6 = ssub.s32 1, %s4
  %s7 = scalar_select 0, %s6, %s4
  $region1: #{tpu_custom_call.1} parent=0
    #allocation2 [shape = 'u8[16384]{0}', space=vmem, size = 0x4000, scoped, tag = 'input window, operand 0']
    #allocation3 [shape = 's32[2]{0}', space=sflag, size = 0x8, scoped, tag = 'scoped memory for tpu_custom_call.1']
    #allocation4 [shape = 's32[2]{0}', space=sflag, size = 0x8, scoped, tag = 'scoped memory for tpu_custom_call.1']
    #allocation5 [shape = 'u8[16384]{0}', space=vmem, size = 0x4000, scoped, tag = 'output window, operand 0']
    %8 = vsyncpa [#allocation3], 0
    %s9 = scalar_lea.sflag [#allocation3], 1
    %10 = vsyncpa %s9, 0
    %11 = vsyncpa [#allocation4], 0
    %s12 = scalar_lea.sflag [#allocation4], 1
    %13 = vsyncpa %s12, 0
    loop: start=0, step=1, limit=6
    $region2: #{tpu_custom_call.1} parent=1 // loop_pre_header
      _
    $region3: #{tpu_custom_call.1} parent=1 // loop_header
      %s15 = sphi 0, %s19
      %p16 = scmp.ge.s32.totalorder %s15, 6
      %s22 = sphi 0, %s34
      %s23 = sphi 0, %s30
      %s24 = sphi 0, %s22
      %s25 = sphi 0, %s23
      %s26 = sphi 0, %s24
      %s27 = sphi 0, %s25
      %s39 = sphi 0, %s41
      %s42 = sphi 0, %s39
      %s43 = sphi 0, %s42
      %s59 = sphi 0, %s43
      %s63 = sphi 0, %s63
      %s65 = sphi 0, %s63
      %s66 = sphi 0, %s65
      %s80 = sphi 0, %s66
      %s84 = sphi 0, %s84
      %s86 = sphi 0, %s84
      %s87 = sphi 0, %s86
      %s101 = sphi 0, %s87
      %s109 = sphi 0, %s111
      %s112 = sphi 0, %s109
      %s113 = sphi 0, %s112
      %s129 = sphi 0, %s113
    $region4: #{tpu_custom_call.1} parent=1 // loop_header_branch
      %18 = sbr.rel (%p16) target = $region8
    $region5: #{tpu_custom_call.1} parent=1 // loop_body
      %s20 = ssub.s32 %s15, 1
      %s21 = ssub.s32 %s15, 2
      %s28 = sadd.s32 1, %s23
      %p29 = scmp.ge.s32.totalorder %s28, 2
      %s30 = scalar_select %p29, 0, %s28
      %s31 = sadd.s32 1, %s22
      %s32 = scalar_select %p29, %s31, %s22
      %p33 = scmp.ge.s32.totalorder %s32, 2
      %s34 = scalar_select %p33, 0, %s32
      %s35 = ssub.s32 %s22, %s34
      %s36 = ssub.s32 %s23, %s30
      %s37 = sor.u32 %s35, %s36
      %p38 = scmp.eq.s32.totalorder %s37, 0
      %s40 = sadd.s32 %s39, 1
      %s41 = scalar_select %p38, %s39, %s40
      %p44 = pneg %p38
      %p45 = scmp.eq.s32.totalorder %s15, 3
      %p46 = por %p44, %p45
      %p47 = scmp.ne.s32.totalorder %s39, %s42
      %p48 = scmp.eq.s32.totalorder %s15, 0
      %p49 = por %p47, %p48
      %p50 = scmp.ne.s32.totalorder %s39, %s42
      %p51 = scmp.eq.s32.totalorder %s20, 3
      %p52 = por %p50, %p51
      %p53 = scmp.ne.s32.totalorder %s42, %s43
      %p54 = scmp.eq.s32.totalorder %s20, 0
      %p55 = por %p53, %p54
      %p56 = scmp.ne.s32.totalorder %s42, %s43
      %p57 = scmp.eq.s32.totalorder %s21, 3
      %p58 = por %p56, %p57
      %p60 = scmp.ne.s32.totalorder %s43, %s59
      %p61 = scmp.eq.s32.totalorder %s21, 0
      %p62 = por %p60, %p61
      %s64 = sadd.s32 %s63, 1
      %p67 = scmp.eq.s32.totalorder %s15, 3
      %p68 = scmp.ne.s32.totalorder %s63, %s65
      %p69 = scmp.eq.s32.totalorder %s15, 0
      %p70 = por %p68, %p69
      %p71 = scmp.ne.s32.totalorder %s63, %s65
      %p72 = scmp.eq.s32.totalorder %s20, 3
      %p73 = por %p71, %p72
      %p74 = scmp.ne.s32.totalorder %s65, %s66
      %p75 = scmp.eq.s32.totalorder %s20, 0
      %p76 = por %p74, %p75
      %p77 = scmp.ne.s32.totalorder %s65, %s66
      %p78 = scmp.eq.s32.totalorder %s21, 3
      %p79 = por %p77, %p78
      %p81 = scmp.ne.s32.totalorder %s66, %s80
      %p82 = scmp.eq.s32.totalorder %s21, 0
      %p83 = por %p81, %p82
      %s85 = sadd.s32 %s84, 1
      %p88 = scmp.eq.s32.totalorder %s15, 3
      %p89 = scmp.ne.s32.totalorder %s84, %s86
      %p90 = scmp.eq.s32.totalorder %s15, 0
      %p91 = por %p89, %p90
      %p92 = scmp.ne.s32.totalorder %s84, %s86
      %p93 = scmp.eq.s32.totalorder %s20, 3
      %p94 = por %p92, %p93
      %p95 = scmp.ne.s32.totalorder %s86, %s87
      %p96 = scmp.eq.s32.totalorder %s20, 0
      %p97 = por %p95, %p96
      %p98 = scmp.ne.s32.totalorder %s86, %s87
      %p99 = scmp.eq.s32.totalorder %s21, 3
      %p100 = por %p98, %p99
      %p102 = scmp.ne.s32.totalorder %s87, %s101
      %p103 = scmp.eq.s32.totalorder %s21, 0
      %p104 = por %p102, %p103
      %s105 = ssub.s32 %s22, %s34
      %s106 = ssub.s32 %s23, %s30
      %s107 = sor.u32 %s105, %s106
      %p108 = scmp.eq.s32.totalorder %s107, 0
      %s110 = sadd.s32 %s109, 1
      %s111 = scalar_select %p108, %s109, %s110
      %p114 = pneg %p108
      %p115 = scmp.eq.s32.totalorder %s15, 3
      %p116 = por %p114, %p115
      %p117 = scmp.ne.s32.totalorder %s109, %s112
      %p118 = scmp.eq.s32.totalorder %s15, 0
      %p119 = por %p117, %p118
      %p120 = scmp.ne.s32.totalorder %s109, %s112
      %p121 = scmp.eq.s32.totalorder %s20, 3
      %p122 = por %p120, %p121
      %p123 = scmp.ne.s32.totalorder %s112, %s113
      %p124 = scmp.eq.s32.totalorder %s20, 0
      %p125 = por %p123, %p124
      %p126 = scmp.ne.s32.totalorder %s112, %s113
      %p127 = scmp.eq.s32.totalorder %s21, 3
      %p128 = por %p126, %p127
      %p130 = scmp.ne.s32.totalorder %s113, %s129
      %p131 = scmp.eq.s32.totalorder %s21, 0
      %p132 = por %p130, %p131
      %p133 = scmp.le.s32.totalorder 1, %s15
      %p134 = scmp.lt.s32.totalorder %s15, 5
      %p135 = pnand %p133, %p134
      %p136 = pneg %p135
      // Predicated region
      $region9: #{tpu_custom_call.1} parent=5 // pred_check
        _
      $region10: #{tpu_custom_call.1} parent=5 // pred_check_branch
        %138 = sbr.rel (%p135) target = $region12
      $region11: #{tpu_custom_call.1} parent=5 // pred_region
        %s139 = ssub.s32 %s15, 1
        // Predicated region
        $region13: #{tpu_custom_call.1} parent=11 // pred_check
          %p140 = pneg %p76
        $region14: #{tpu_custom_call.1} parent=11 // pred_check_branch
          %142 = sbr.rel (%p140) target = $region16
        $region15: #{tpu_custom_call.1} parent=11 // pred_region
          _
        $region16: #{tpu_custom_call.1} parent=11 // pred_fallthru
          _
        // Predicated region
        $region17: #{tpu_custom_call.1} parent=11 // pred_check
          %p143 = pneg %p97
        $region18: #{tpu_custom_call.1} parent=11 // pred_check_branch
          %145 = sbr.rel (%p143) target = $region20
        $region19: #{tpu_custom_call.1} parent=11 // pred_region
          _
        $region20: #{tpu_custom_call.1} parent=11 // pred_fallthru
          _
      $region12: #{tpu_custom_call.1} parent=5 // pred_fallthru
        _
      %p146 = scmp.lt.s32.totalorder %s15, 4
      // Predicated region
      $region21: #{tpu_custom_call.1} parent=5 // pred_check
        %p147 = pneg %p146
      $region22: #{tpu_custom_call.1} parent=5 // pred_check_branch
        %149 = sbr.rel (%p147) target = $region24
      $region23: #{tpu_custom_call.1} parent=5 // pred_region
        // Predicated region
        $region25: #{tpu_custom_call.1} parent=23 // pred_check
          %p150 = pneg %p49
        $region26: #{tpu_custom_call.1} parent=23 // pred_check_branch
          %152 = sbr.rel (%p150) target = $region28
        $region27: #{tpu_custom_call.1} parent=23 // pred_region
          %s153 = sand.u32 %s39, 1
          %s154 = scalar_lea.sflag [#allocation3], %s153
          %s155 = sand.u32 %s39, 1
          %s156 = smul.addr %s155, 16
          %s157 = scalar_lea.vmem [#allocation2], %s156
          %s159 = ssub.s32 256, 256
          %160 = vsyncadd %s154, %s159
          %s161 = smul.addr %s22, 4
          %s162 = sadd.s32 %s23, %s161
          %s163 = smul.addr %s162, 128
          %s164 = scalar_lea.hbm %s0, %s163
          %s165 = sshll.u32 %s157, 4
          %s166 = int_to_ptr.vmem [resolvable:$true] %s165
          %171 = dma.hbm_to_vmem [thread:$0]  %s164, 256, %s166, %s154, 256, 128, 8
        $region28: #{tpu_custom_call.1} parent=23 // pred_fallthru
          _
      $region24: #{tpu_custom_call.1} parent=5 // pred_fallthru
        _
      %p172 = scmp.le.s32.totalorder 1, %s15
      %p173 = scmp.lt.s32.totalorder %s15, 5
      %p174 = pnand %p172, %p173
      %p175 = pneg %p174
      // Predicated region
      $region29: #{tpu_custom_call.1} parent=5 // pred_check
        _
      $region30: #{tpu_custom_call.1} parent=5 // pred_check_branch
        %177 = sbr.rel (%p174) target = $region32
      $region31: #{tpu_custom_call.1} parent=5 // pred_region
        %s178 = ssub.s32 %s15, 1
        %s179 = sand.u32 %s42, 1
        %s180 = scalar_lea.sflag [#allocation3], %s179
        %s181 = sand.u32 %s42, 1
        %s182 = smul.addr %s181, 16
        %s183 = scalar_lea.vmem [#allocation2], %s182
        // Predicated region
        $region33: #{tpu_custom_call.1} parent=31 // pred_check
          %p184 = pneg %p55
        $region34: #{tpu_custom_call.1} parent=31 // pred_check_branch
          %186 = sbr.rel (%p184) target = $region36
        $region35: #{tpu_custom_call.1} parent=31 // pred_region
          %187 = dma.done %s180, 256
        $region36: #{tpu_custom_call.1} parent=31 // pred_fallthru
          _
        %s188 = sand.u32 %s42, 1
        %s189 = scalar_lea.sflag [#allocation3], %s188
        %s190 = sand.u32 %s42, 1
        %s191 = smul.addr %s190, 16
        %s192 = scalar_lea.vmem [#allocation2], %s191
        %p193 = pneg %p55
        %p194 = pneg %p52
        %p195 = pneg %p76
        %p196 = pneg %p73
        %p197 = pneg %p97
        %p198 = pneg %p94
        %p199 = pneg %p125
        %p200 = pneg %p122
        %s201 = sand.u32 %s112, 1
        %s202 = scalar_lea.sflag [#allocation4], %s201
        %s203 = sand.u32 %s112, 1
        %s204 = smul.addr %s203, 16
        %s205 = scalar_lea.vmem [#allocation5], %s204
        %v206 = vld [vmem:[%s183] sm:$0xff]
        %v207 = vld [vmem:[%s183 + $0x8] sm:$0xff]
        %v208 = vld [vmem:[%s1] sm:$0xff]
        %v209 = vld [vmem:[%s1 + $0x8] sm:$0xff]
        %v210 = vld [vmem:[%s2] sm:$0xff]
        %v211 = vld [vmem:[%s2 + $0x8] sm:$0xff]
        %213 = vset.pattern.permute.xlu0 0
        %214 = vperm.xlu0 %213, %v208
        %v215 = vpop.permute.xlu0 %214
        %218 = vset.pattern.permute.xlu0 0
        %219 = vperm.xlu0 %218, %v209
        %v220 = vpop.permute.xlu0 %219
        %v222 = vsub.f32 %v206, %v215
        %v223 = vsub.f32 %v207, %v220
        %225 = vset.pattern.permute.xlu0 0
        %226 = vperm.xlu0 %225, %v210
        %v227 = vpop.permute.xlu0 %226
        %230 = vset.pattern.permute.xlu0 0
        %231 = vperm.xlu0 %230, %v211
        %v232 = vpop.permute.xlu0 %231
        %v234 = vmul.f32 %v222, %v227
        %v235 = vmul.f32 %v223, %v232
        %236 = vst [vmem:[%s205] sm:$0xff] %v234
        %237 = vst [vmem:[%s205 + $0x8] sm:$0xff] %v235
        %s238 = sand.u32 %s112, 1
        %s239 = scalar_lea.sflag [#allocation4], %s238
        %s240 = sand.u32 %s112, 1
        %s241 = smul.addr %s240, 16
        %s242 = scalar_lea.vmem [#allocation5], %s241
        // Predicated region
        $region37: #{tpu_custom_call.1} parent=31 // pred_check
          %p243 = pneg %p122
        $region38: #{tpu_custom_call.1} parent=31 // pred_check_branch
          %245 = sbr.rel (%p243) target = $region40
        $region39: #{tpu_custom_call.1} parent=31 // pred_region
          %s247 = ssub.s32 256, 256
          %248 = vsyncadd %s239, %s247
          %s249 = smul.addr %s24, 4
          %s250 = sadd.s32 %s25, %s249
          %s251 = smul.addr %s250, 128
          %s252 = scalar_lea.hbm %s3, %s251
          %s253 = sshll.u32 %s242, 4
          %s254 = int_to_ptr.vmem [resolvable:$true] %s253
          %259 = dma.vmem_to_hbm [thread:$0]  %s254, 256, %s252, %s239, 128, 256, 8
        $region40: #{tpu_custom_call.1} parent=31 // pred_fallthru
          _
      $region32: #{tpu_custom_call.1} parent=5 // pred_fallthru
        _
      %p260 = scmp.le.s32.totalorder 2, %s15
      // Predicated region
      $region41: #{tpu_custom_call.1} parent=5 // pred_check
        %p261 = pneg %p260
      $region42: #{tpu_custom_call.1} parent=5 // pred_check_branch
        %263 = sbr.rel (%p261) target = $region44
      $region43: #{tpu_custom_call.1} parent=5 // pred_region
        %s264 = ssub.s32 %s15, 2
        // Predicated region
        $region45: #{tpu_custom_call.1} parent=43 // pred_check
          %p265 = pneg %p128
        $region46: #{tpu_custom_call.1} parent=43 // pred_check_branch
          %267 = sbr.rel (%p265) target = $region48
        $region47: #{tpu_custom_call.1} parent=43 // pred_region
          %s268 = sand.u32 %s113, 1
          %s269 = scalar_lea.sflag [#allocation4], %s268
          %s270 = sand.u32 %s113, 1
          %s271 = smul.addr %s270, 16
          %s272 = scalar_lea.vmem [#allocation5], %s271
          %273 = dma.done %s269, 256
        $region48: #{tpu_custom_call.1} parent=43 // pred_fallthru
          _
      $region44: #{tpu_custom_call.1} parent=5 // pred_fallthru
        _
    $region6: #{tpu_custom_call.1} parent=1 // loop_footer
      %s19 = sadd.s32 1, %s15
    $region7: #{tpu_custom_call.1} parent=1 // loop_footer_branch
      %14 = sbr.rel target = $region3
    $region8: #{tpu_custom_call.1} parent=1 // loop_exit
      _
    %274 = vsyncpa [#allocation3], 1
    %s275 = scalar_lea.sflag [#allocation3], 1
    %276 = vsyncpa %s275, 1
    %277 = vsyncpa [#allocation4], 1
    %s278 = scalar_lea.sflag [#allocation4], 1
    %279 = vsyncpa %s278, 1

</llo_original>
